<compile_context>
chip_gen: v5e
topology: v5e:2x2
jax: 0.10.0
libtpu: 0.0.40
codegen_flags: <defaults>
</compile_context>

<pallas_src>
import jax
import jax.numpy as jnp
from jax.experimental import pallas as pl
from jax.experimental.pallas import tpu as pltpu


def qt_output_kernel(x_ref, res_ref, wT_ref, b_ref, out_ref):
    # x_ref:   (bm, I)   rows of hidden_states (intermediate activations)
    # res_ref: (bm, H)   rows of input_tensor (residual)
    # wT_ref:  (I, H)    dense weight, pre-transposed in the wrapper
    # b_ref:   (1, H)    dense bias
    y = jnp.dot(x_ref[...], wT_ref[...], preferred_element_type=jnp.float32)
    out_ref[...] = (y + b_ref[...] + res_ref[...]).astype(out_ref.dtype)


def _pick_block_rows(m):
    # Largest convenient sublane-aligned tile that evenly divides the row count;
    # fall back to the full extent (always legal: block == full dim).
    for bm in (512, 256, 128, 64, 32, 16, 8):
        if m % bm == 0:
            return bm
    return m


def qt_output(hidden_states, input_tensor, w_dense, b_dense):
    """hidden_states: (B, S, I); input_tensor: (B, S, H); w_dense: (H, I); b_dense: (H,)."""
    B, S, I = hidden_states.shape
    H = w_dense.shape[0]
    M = B * S

    # Fold batch*seq into the row axis -> a single (or few) grid step(s)
    # instead of a serial per-batch grid on single-TC v5e/v6e.
    x2d = hidden_states.reshape(M, I)
    r2d = input_tensor.reshape(M, H)
    wT = w_dense.T                     # (I, H): kernel does a plain row-major matmul
    b = b_dense.reshape(1, H)

    bm = _pick_block_rows(M)
    grid = (M // bm,) if M % bm == 0 else (1,)
    if M % bm != 0:
        bm = M

    out2d = pl.pallas_call(
        qt_output_kernel,
        out_shape=jax.ShapeDtypeStruct((M, H), hidden_states.dtype),
        grid=grid,
        in_specs=[
            pl.BlockSpec((bm, I), lambda i: (i, 0)),   # hidden_states rows
            pl.BlockSpec((bm, H), lambda i: (i, 0)),   # residual rows
            pl.BlockSpec((I, H), lambda i: (0, 0)),    # W^T (replicated)
            pl.BlockSpec((1, H), lambda i: (0, 0)),    # bias (replicated)
        ],
        out_specs=pl.BlockSpec((bm, H), lambda i: (i, 0)),
        compiler_params=pltpu.CompilerParams(
            dimension_semantics=("parallel",),
        ),
    )(x2d, r2d, wT, b)

    return out2d.reshape(B, S, H)


def qt_output_reference(hidden_states, input_tensor, w_dense, b_dense):
    """Pure-JAX reference matching the PyTorch forward (dropout = identity)."""
    return hidden_states @ w_dense.T + b_dense + input_tensor


if __name__ == "__main__":
    # Small config consistent with the module:
    #   intermediate_size=128, hidden_size=32, batch=2, seq=8.
    B, S = 2, 8
    I, H = 128, 32

    key = jax.random.PRNGKey(0)
    k0, k1, k2, k3 = jax.random.split(key, 4)
    scale = 0.05
    hidden_states = jax.random.normal(k0, (B, S, I), jnp.float32)
    input_tensor = jax.random.normal(k1, (B, S, H), jnp.float32)
    w_dense = scale * jax.random.normal(k2, (H, I), jnp.float32)
    b_dense = scale * jax.random.normal(k3, (H,), jnp.float32)

    out = qt_output(hidden_states, input_tensor, w_dense, b_dense)
    out = jax.block_until_ready(out)

    ref = qt_output_reference(hidden_states, input_tensor, w_dense, b_dense)
    assert out.shape == (B, S, H)
    assert jnp.allclose(out, ref, rtol=1e-5, atol=1e-5), "mismatch vs reference"

    # TODO(synk): nn.Dropout is identity in inference mode and is not
    # implemented (would need pltpu.prng_* for train-mode stochastic masking).
    print("KERNEL_OK")
</pallas_src>

<mosaic_0001>
module attributes {stable_mosaic.version = 11 : i64} {
  func.func @qt_output_kernel(%arg0: i32, %arg1: memref<16x128xf32, #tpu.memory_space<vmem>>, %arg2: memref<16x32xf32, #tpu.memory_space<vmem>>, %arg3: memref<128x32xf32, #tpu.memory_space<vmem>>, %arg4: memref<1x32xf32, #tpu.memory_space<vmem>>, %arg5: memref<16x32xf32, #tpu.memory_space<vmem>>) attributes {dimension_semantics = [#tpu.dimension_semantics<parallel>], iteration_bounds = array<i64: 1>, scalar_prefetch = 0 : i64, scratch_operands = 0 : i64, tpu.core_type = #tpu.core_type<tc>, window_params = [{transform_indices = @transform_0, window_bounds = array<i64: 16, 128>}, {transform_indices = @transform_1, window_bounds = array<i64: 16, 32>}, {pipeline_mode = #tpu.pipeline_mode<synchronous>, transform_indices = @transform_2, window_bounds = array<i64: 128, 32>}, {pipeline_mode = #tpu.pipeline_mode<synchronous>, transform_indices = @transform_3, window_bounds = array<i64: 1, 32>}, {transform_indices = @transform_4, window_bounds = array<i64: 16, 32>}]} {
    %c0 = arith.constant 0 : index
    %c0_0 = arith.constant 0 : index
    %0 = vector.load %arg1[%c0, %c0_0] : memref<16x128xf32, #tpu.memory_space<vmem>>, vector<16x128xf32>
    %c0_1 = arith.constant 0 : index
    %c0_2 = arith.constant 0 : index
    %1 = vector.load %arg3[%c0_1, %c0_2] : memref<128x32xf32, #tpu.memory_space<vmem>>, vector<128x32xf32>
    %cst = arith.constant dense<0.000000e+00> : vector<16x32xf32>
    %2 = tpu.matmul %0, %1, %cst {dimension_numbers = #tpu.dot_dimension_numbers<[1], [0], [0], [1], [0, 0, 1, 1], [], []>} : vector<16x128xf32>, vector<128x32xf32>, vector<16x32xf32> -> vector<16x32xf32>
    %c0_3 = arith.constant 0 : index
    %c0_4 = arith.constant 0 : index
    %3 = vector.load %arg4[%c0_3, %c0_4] : memref<1x32xf32, #tpu.memory_space<vmem>>, vector<1x32xf32>
    %4 = vector.broadcast %3 : vector<1x32xf32> to vector<16x32xf32>
    %5 = arith.addf %2, %4 : vector<16x32xf32>
    %c0_5 = arith.constant 0 : index
    %c0_6 = arith.constant 0 : index
    %6 = vector.load %arg2[%c0_5, %c0_6] : memref<16x32xf32, #tpu.memory_space<vmem>>, vector<16x32xf32>
    %7 = arith.addf %5, %6 : vector<16x32xf32>
    %c0_7 = arith.constant 0 : index
    %c0_8 = arith.constant 0 : index
    %8 = vector.load %arg5[%c0_7, %c0_8] : memref<16x32xf32, #tpu.memory_space<vmem>>, vector<16x32xf32>
    tpu.vector_store %arg5[%c0_7, %c0_8], %7 {strides = array<i32>} : memref<16x32xf32, #tpu.memory_space<vmem>>, vector<16x32xf32>,
    return
  }
  func.func @transform_0(%arg0: i32) -> (i32, i32) {
    %c0_i32 = arith.constant 0 : i32
    %c0_i32_0 = arith.constant 0 : i32
    return %arg0, %c0_i32 : i32, i32
  }
  func.func @transform_1(%arg0: i32) -> (i32, i32) {
    %c0_i32 = arith.constant 0 : i32
    %c0_i32_0 = arith.constant 0 : i32
    return %arg0, %c0_i32 : i32, i32
  }
  func.func @transform_2(%arg0: i32) -> (i32, i32) {
    %c0_i32 = arith.constant 0 : i32
    %c0_i32_0 = arith.constant 0 : i32
    %c0_i32_1 = arith.constant 0 : i32
    return %c0_i32, %c0_i32_0 : i32, i32
  }
  func.func @transform_3(%arg0: i32) -> (i32, i32) {
    %c0_i32 = arith.constant 0 : i32
    %c0_i32_0 = arith.constant 0 : i32
    %c0_i32_1 = arith.constant 0 : i32
    return %c0_i32, %c0_i32_0 : i32, i32
  }
  func.func @transform_4(%arg0: i32) -> (i32, i32) {
    %c0_i32 = arith.constant 0 : i32
    %c0_i32_0 = arith.constant 0 : i32
    return %arg0, %c0_i32 : i32, i32
  }
}

</mosaic_0001>

<llo_original>
// kernel: tpu_custom_call.1
$region0: #{tpu_custom_call.1}
  #allocation0 [shape = 'u32[]', space=smem, size = 0x4, offset = 0x4, fixed_abs, tag = 'smem constant byte address 0x4 - core index']
  #allocation1 [shape = 'u32[72,128]{1,0:T(1,128)}', space=vmem, size = 0x9000, scoped, tag = 'internal scratch']
  %s0 = inlined_call_operand.vmem [shape: f32[16,128], index: 0, kind: input, shape index: {}]
  %s1 = inlined_call_operand.vmem [shape: f32[16,32], index: 1, kind: input, shape index: {}]
  %s2 = inlined_call_operand.vmem [shape: f32[128,32], index: 2, kind: input, shape index: {}]
  %s3 = inlined_call_operand.vmem [shape: f32[1,32], index: 3, kind: input, shape index: {}]
  %s4 = inlined_call_operand.hbm [shape: f32[16,32], index: 4, kind: output, shape index: {}]
  %s5 = sld [smem:[#allocation0]]
  $region26: #{tpu_custom_call.1} parent=0
    _
  %s7 = ssub.s32 1, %s5
  %s8 = scalar_select 0, %s7, %s5
  $region1: #{tpu_custom_call.1} parent=0
    #allocation2 [shape = 'u8[8192]{0}', space=vmem, size = 0x2000, scoped, tag = 'output window, operand 0, single buffered']
    #allocation3 [shape = 's32[1]{0}', space=sflag, size = 0x4, scoped, tag = 'scoped memory for tpu_custom_call.1']
    %9 = vsyncpa [#allocation3], 0
    // Predicated region
    $region2: #{tpu_custom_call.1} parent=1 // pred_check
      _
    $region3: #{tpu_custom_call.1} parent=1 // pred_check_branch
      %11 = sbr.rel (0) target = $region5
    $region4: #{tpu_custom_call.1} parent=1 // pred_region
      _
    $region5: #{tpu_custom_call.1} parent=1 // pred_fallthru
      _
    // Predicated region
    $region6: #{tpu_custom_call.1} parent=1 // pred_check
      _
    $region7: #{tpu_custom_call.1} parent=1 // pred_check_branch
      %13 = sbr.rel (0) target = $region9
    $region8: #{tpu_custom_call.1} parent=1 // pred_region
      _
    $region9: #{tpu_custom_call.1} parent=1 // pred_fallthru
      _
    // Predicated region
    $region10: #{tpu_custom_call.1} parent=1 // pred_check
      _
    $region11: #{tpu_custom_call.1} parent=1 // pred_check_branch
      %15 = sbr.rel (0) target = $region13
    $region12: #{tpu_custom_call.1} parent=1 // pred_region
      _
    $region13: #{tpu_custom_call.1} parent=1 // pred_fallthru
      _
    // Predicated region
    $region14: #{tpu_custom_call.1} parent=1 // pred_check
      _
    $region15: #{tpu_custom_call.1} parent=1 // pred_check_branch
      %17 = sbr.rel (0) target = $region17
    $region16: #{tpu_custom_call.1} parent=1 // pred_region
      _
    $region17: #{tpu_custom_call.1} parent=1 // pred_fallthru
      _
    %v18 = vld [vmem:[%s0] sm:$0xff]
    %v19 = vld [vmem:[%s0 + $0x8] sm:$0xff]
    %v20 = vld [vmem:[%s2] sm:$0xff]
    %v21 = vld [vmem:[%s2 + $0x8] sm:$0xff]
    %v22 = vld [vmem:[%s2 + $0x10] sm:$0xff]
    %v23 = vld [vmem:[%s2 + $0x18] sm:$0xff]
    %v24 = vld [vmem:[%s2 + $0x20] sm:$0xff]
    %v25 = vld [vmem:[%s2 + $0x28] sm:$0xff]
    %v26 = vld [vmem:[%s2 + $0x30] sm:$0xff]
    %v27 = vld [vmem:[%s2 + $0x38] sm:$0xff]
    %v28 = vld [vmem:[%s2 + $0x40] sm:$0xff]
    %v29 = vld [vmem:[%s2 + $0x48] sm:$0xff]
    %v30 = vld [vmem:[%s2 + $0x50] sm:$0xff]
    %v31 = vld [vmem:[%s2 + $0x58] sm:$0xff]
    %v32 = vld [vmem:[%s2 + $0x60] sm:$0xff]
    %v33 = vld [vmem:[%s2 + $0x68] sm:$0xff]
    %v34 = vld [vmem:[%s2 + $0x70] sm:$0xff]
    %v35 = vld [vmem:[%s2 + $0x78] sm:$0xff]
    %v36 = vld [vmem:[%s3] sm:$0x1]
    %v38 = vperm.slane %v36, 0
    %40 = vmatpush.msra.mxu0 %v35
    %41 = vmatpush.msra.mxu0 %v34
    %42 = vmatpush.msra.mxu0 %v33
    %43 = vmatpush.msra.mxu0 %v32
    %44 = vmatpush.msra.mxu0 %v31
    %45 = vmatpush.msra.mxu0 %v30
    %46 = vmatpush.msra.mxu0 %v29
    %47 = vmatpush.msra.mxu0 %v28
    %48 = vmatpush.msra.mxu0 %v27
    %49 = vmatpush.msra.mxu0 %v26
    %50 = vmatpush.msra.mxu0 %v25
    %51 = vmatpush.msra.mxu0 %v24
    %52 = vmatpush.msra.mxu0 %v23
    %53 = vmatpush.msra.mxu0 %v22
    %54 = vmatpush.msra.mxu0 %v21
    %55 = vmatpush.msra.mxu0 %v20
    %56 = vmatmul.f32.gmra.mxu0 %v18
    %v57 = vpop.f32.mrf.mxu0
    %v58 = vadd.f32 %v38, %v57
    %59 = vmatmul.f32.gmra.mxu0 %v19
    %v60 = vpop.f32.mrf.mxu0
    %v61 = vadd.f32 %v38, %v60
    %62 = vdwg.mxu0
    %v63 = vld [vmem:[%s1] sm:$0xff]
    %v64 = vld [vmem:[%s1 + $0x8] sm:$0xff]
    %v65 = vadd.f32 %v58, %v63
    %v66 = vadd.f32 %v61, %v64
    %vm67 = vcmask 261120
    %68 = vst.msk [vmem:[#allocation2] sm:$0xff] %vm67, %v65
    %69 = vst.msk [vmem:[#allocation2 + $0x8] sm:$0xff] %vm67, %v66
    // Predicated region
    $region18: #{tpu_custom_call.1} parent=1 // pred_check
      _
    $region19: #{tpu_custom_call.1} parent=1 // pred_check_branch
      %71 = sbr.rel (0) target = $region21
    $region20: #{tpu_custom_call.1} parent=1 // pred_region
      %73 = vsyncadd [#allocation3], 0
      %s74 = sshll.u32 [#allocation2], 4
      %s75 = int_to_ptr.vmem [resolvable:$true] %s74
      %s76 = sshll.u32 %s4, 4
      %s77 = int_to_ptr.hbm [resolvable:$true] %s76
      %82 = dma.vmem_to_hbm [thread:$0]  %s75, 256, %s77, [#allocation3], 128, 128, 8
    $region21: #{tpu_custom_call.1} parent=1 // pred_fallthru
      _
    // Predicated region
    $region22: #{tpu_custom_call.1} parent=1 // pred_check
      _
    $region23: #{tpu_custom_call.1} parent=1 // pred_check_branch
      %84 = sbr.rel (0) target = $region25
    $region24: #{tpu_custom_call.1} parent=1 // pred_region
      %86 = dma.done [#allocation3], 256
    $region25: #{tpu_custom_call.1} parent=1 // pred_fallthru
      _
    %87 = vsyncpa [#allocation3], 1

</llo_original>
